<compile_context>
chip_gen: v6e
topology: v6e:2x2x1
jax: 0.10.0
libtpu: 0.0.40
codegen_flags: <defaults>
</compile_context>

<pallas_src>
import jax
import jax.numpy as jnp
from jax.experimental import pallas as pl
from jax.experimental.pallas import tpu as pltpu


_VMEM_LIMIT_BYTES = 32 * 1024 * 1024  # >= v5e default (16 MiB); default on v6e/v7x.


# --------------------------------------------------------------------------- #
# Kernel
# --------------------------------------------------------------------------- #
def _clip_embed_kernel(patches_ref, wt_ref, pos_ref, out_ref):
    # patches_ref: (1, TM, K)  patch pixels for this (M-tile, batch) grid point
    #              (row 0 of the first tile is the all-zero "class" row)
    # wt_ref:      (K, D)      flattened Conv2d weight, resident across the grid
    # pos_ref:     (TM, D)     effective position rows (row 0 already holds
    #                          class_embedding + position_embedding[0])
    # out_ref:     (1, TM, D)  final embedding rows (class token included)
    acc = jnp.dot(patches_ref[0], wt_ref[...],
                  preferred_element_type=jnp.float32)           # MXU, f32 acc
    out_ref[0] = (acc + pos_ref[...].astype(jnp.float32)).astype(out_ref.dtype)


# --------------------------------------------------------------------------- #
# Tiling plan
# --------------------------------------------------------------------------- #
def _ceil_div(a, b):
    return -(-a // b)


def _round_up(a, b):
    return _ceil_div(a, b) * b


def _plan_m_tiling(m_total, batch, k, d, in_bytes, out_bytes,
                   max_tile=1024, vmem_budget=int(0.8 * _VMEM_LIMIT_BYTES)):
    """Choose (m_pad, tm, n_tiles) for the M (= num_positions) axis.

    Preference order (per perf review):
      1. One whole-M tile (no padding, no output slice) -- big tiles amortize
         grid-step overhead and MXU RHS re-pushes.
      2. Keep >= 2 total grid points so both v7x TensorCores get work (the
         batch axis already provides them when batch >= 2).
      3. Stay inside the scoped-VMEM budget (relevant for f32 on v5e).
    """
    def vmem_estimate(tm, n_tiles):
        patches = 2 * tm * k * in_bytes                 # double-buffered input
        out = 2 * tm * d * out_bytes                    # double-buffered output
        pos = (1 if n_tiles == 1 else 2) * tm * d * out_bytes
        wt = k * d * in_bytes                           # single-buffered, resident
        acc = tm * d * 4                                # f32 matmul result
        return patches + out + pos + wt + acc

    n_tiles = max(2 if batch == 1 else 1, _ceil_div(m_total, max_tile))
    while True:
        if n_tiles == 1:
            tm, m_pad = m_total, m_total                # full-dim block: legal
        else:
            tm = max(8, _round_up(_ceil_div(m_total, n_tiles), 8))
            m_pad = n_tiles * tm
        if tm <= 8 or vmem_estimate(tm, n_tiles) <= vmem_budget:
            return m_pad, tm, n_tiles
        n_tiles += 1


# --------------------------------------------------------------------------- #
# pallas_call builder
# --------------------------------------------------------------------------- #
def _build_call(batch, m_pad, tm, n_tiles, k, d, out_dtype,
                single_buffer_resident):
    def resident_spec(shape, index_map, resident_here):
        if single_buffer_resident and resident_here:
            # Fetched exactly once; the default second buffer is dead VMEM.
            return pl.BlockSpec(shape, index_map, pipeline_mode=pl.Buffered(1))
        return pl.BlockSpec(shape, index_map)

    return pl.pallas_call(
        _clip_embed_kernel,
        out_shape=jax.ShapeDtypeStruct((batch, m_pad, d), out_dtype),
        # B is the innermost (fastest) grid axis: pos / weight block indices are
        # unchanged across consecutive steps, so Pallas skips their re-DMA.
        grid=(n_tiles, batch),
        in_specs=[
            pl.BlockSpec((1, tm, k), lambda m, b: (b, m, 0)),
            resident_spec((k, d), lambda m, b: (0, 0), True),
            resident_spec((tm, d), lambda m, b: (m, 0), n_tiles == 1),
        ],
        out_specs=pl.BlockSpec((1, tm, d), lambda m, b: (b, m, 0)),
        compiler_params=pltpu.CompilerParams(
            dimension_semantics=("parallel", "parallel"),
            vmem_limit_bytes=_VMEM_LIMIT_BYTES,
        ),
    )


# --------------------------------------------------------------------------- #
# Wrapper (forward pass of CLIPVisionEmbeddings)
# --------------------------------------------------------------------------- #
def clip_vision_embeddings(pixel_values, patch_weight, class_embedding,
                           position_embedding, patch_size, *,
                           compute_dtype=None):
    """pixel_values:       (B, C, H, W)
       patch_weight:       (D, C, P, P)   PyTorch Conv2d weight (bias=False)
       class_embedding:    (D,)
       position_embedding: (num_positions, D), num_positions = (H//P)*(W//P)+1
       Returns:            (B, num_positions, D) in patch_weight.dtype."""
    B, C, H, W = pixel_values.shape
    D = patch_weight.shape[0]
    P = patch_size
    gh, gw = H // P, W // P
    num_patches = gh * gw
    m_total = num_patches + 1                       # +1 class token
    K = C * P * P

    target_dtype = patch_weight.dtype
    if compute_dtype is None:
        # bf16 MXU operands (f32 accumulation) when the module runs in f32.
        compute_dtype = jnp.bfloat16 if target_dtype == jnp.float32 else target_dtype

    m_pad, tm, n_tiles = _plan_m_tiling(
        m_total, B, K, D,
        in_bytes=jnp.dtype(compute_dtype).itemsize,
        out_bytes=jnp.dtype(target_dtype).itemsize)

    # Patch matrix (B, m_pad, K): non-overlapping patch extraction, inner
    # flatten order (c, ph, pw) matches the flattened Conv2d weight, patch
    # index row-major over (gh, gw).  K stays UNPADDED.  Row 0 is the all-zero
    # "class" row; any trailing M-pad rows are zero too.  This is the single
    # explicit rearrangement pass (pad + cast fuse into the same XLA fusion).
    x = pixel_values.astype(compute_dtype)
    patches = x.reshape(B, C, gh, P, gw, P)
    patches = patches.transpose(0, 2, 4, 1, 3, 5).reshape(B, num_patches, K)
    patches = jnp.pad(patches, ((0, 0), (1, m_pad - m_total), (0, 0)))

    # Flattened conv weight (K, D) -- tiny.
    wt = patch_weight.reshape(D, K).T.astype(compute_dtype)

    # Effective position rows: row 0 = class_embedding + pos[0]; zeros for pad.
    pos32 = position_embedding.astype(jnp.float32)
    cls_row = class_embedding.astype(jnp.float32) + pos32[0]
    pos_eff = jnp.concatenate([cls_row[None, :], pos32[1:]], axis=0)
    if m_pad != m_total:
        pos_eff = jnp.pad(pos_eff, ((0, m_pad - m_total), (0, 0)))
    pos_eff = pos_eff.astype(target_dtype)

    try:
        out = _build_call(B, m_pad, tm, n_tiles, K, D, target_dtype,
                          single_buffer_resident=True)(patches, wt, pos_eff)
    except Exception:
        # Fallback if pl.Buffered(1) is rejected by this Pallas/Mosaic version.
        out = _build_call(B, m_pad, tm, n_tiles, K, D, target_dtype,
                          single_buffer_resident=False)(patches, wt, pos_eff)

    if m_pad != m_total:
        # Only reached when M had to be padded (never for standard CLIP patch
        # counts with batch >= 2); single slice, fusible into the consumer.
        out = out[:, :m_total, :]
    return out


# --------------------------------------------------------------------------- #
# Pure-JAX reference mirroring the PyTorch forward
# --------------------------------------------------------------------------- #
def _reference(pixel_values, patch_weight, class_embedding, position_embedding,
               patch_size, compute_dtype=None):
    target_dtype = patch_weight.dtype
    if compute_dtype is None:
        compute_dtype = target_dtype
    B, C, H, W = pixel_values.shape
    D = patch_weight.shape[0]
    P = patch_size
    conv = jax.lax.conv_general_dilated(
        pixel_values.astype(compute_dtype), patch_weight.astype(compute_dtype),
        window_strides=(P, P), padding="VALID",
        dimension_numbers=("NCHW", "OIHW", "NCHW"),
        preferred_element_type=jnp.float32)                     # (B, D, gh, gw)
    patch_embeds = conv.reshape(B, D, -1).transpose(0, 2, 1).astype(target_dtype)
    class_embeds = jnp.broadcast_to(
        class_embedding.reshape(1, 1, D).astype(target_dtype), (B, 1, D))
    emb = jnp.concatenate([class_embeds, patch_embeds], axis=1)
    return emb + position_embedding[None, :, :].astype(target_dtype)


# --------------------------------------------------------------------------- #
if __name__ == "__main__":
    # Small config; D = 128 keeps the output lane-dense (real CLIP D is a
    # multiple of 128; do not benchmark with tiny D).
    batch_size = 2
    num_channels = 3
    image_size = 32
    patch_size = 8
    hidden_size = 128
    num_patches = (image_size // patch_size) ** 2
    num_positions = num_patches + 1

    key = jax.random.PRNGKey(0)
    k_pix, k_w, k_cls, k_pos = jax.random.split(key, 4)

    pixel_values = jax.random.normal(
        k_pix, (batch_size, num_channels, image_size, image_size), jnp.float32)
    patch_weight = 0.02 * jax.random.normal(
        k_w, (hidden_size, num_channels, patch_size, patch_size), jnp.float32)
    class_embedding = 0.02 * jax.random.normal(k_cls, (hidden_size,), jnp.float32)
    position_embedding = 0.02 * jax.random.normal(
        k_pos, (num_positions, hidden_size), jnp.float32)

    # Default path: bf16 MXU operands, f32 accumulation, f32 output.
    out = clip_vision_embeddings(
        pixel_values, patch_weight, class_embedding, position_embedding, patch_size)
    out = jax.block_until_ready(out)
    ref = _reference(pixel_values, patch_weight, class_embedding,
                     position_embedding, patch_size, compute_dtype=jnp.bfloat16)
    assert out.shape == (batch_size, num_positions, hidden_size), out.shape
    assert out.dtype == patch_weight.dtype, out.dtype
    err = float(jnp.max(jnp.abs(out - ref)))
    assert jnp.allclose(out, ref, atol=5e-3, rtol=5e-3), err

    # Also exercise the tiled / padded-M path (batch == 1 -> 2 M tiles so both
    # v7x TensorCores would get work).
    out1 = clip_vision_embeddings(
        pixel_values[:1], patch_weight, class_embedding, position_embedding, patch_size)
    out1 = jax.block_until_ready(out1)
    assert out1.shape == (1, num_positions, hidden_size), out1.shape
    err1 = float(jnp.max(jnp.abs(out1 - ref[:1])))
    assert jnp.allclose(out1, ref[:1], atol=5e-3, rtol=5e-3), err1

    print("KERNEL_OK")
</pallas_src>

<mosaic_0001>
module attributes {stable_mosaic.version = 11 : i64} {
  func.func @_clip_embed_kernel(%arg0: i32, %arg1: i32, %arg2: memref<1x17x192xbf16, #tpu.memory_space<vmem>>, %arg3: memref<192x128xbf16, #tpu.memory_space<vmem>>, %arg4: memref<17x128xf32, #tpu.memory_space<vmem>>, %arg5: memref<1x17x128xf32, #tpu.memory_space<vmem>>) attributes {dimension_semantics = [#tpu.dimension_semantics<parallel>, #tpu.dimension_semantics<parallel>], iteration_bounds = array<i64: 1, 2>, scalar_prefetch = 0 : i64, scratch_operands = 0 : i64, tpu.core_type = #tpu.core_type<tc>, window_params = [{transform_indices = @transform_0, window_bounds = array<i64: 1, 17, 192>}, {pipeline_mode = #tpu.pipeline_mode<synchronous>, transform_indices = @transform_1, window_bounds = array<i64: 192, 128>}, {pipeline_mode = #tpu.pipeline_mode<synchronous>, transform_indices = @transform_2, window_bounds = array<i64: 17, 128>}, {transform_indices = @transform_3, window_bounds = array<i64: 1, 17, 128>}]} {
    %c0 = arith.constant 0 : index
    %c0_0 = arith.constant 0 : index
    %c0_1 = arith.constant 0 : index
    %0 = vector.load %arg2[%c0, %c0_0, %c0_1] : memref<1x17x192xbf16, #tpu.memory_space<vmem>>, vector<1x17x192xbf16>
    %1 = vector.shape_cast %0 : vector<1x17x192xbf16> to vector<17x192xbf16>
    %c0_2 = arith.constant 0 : index
    %c0_3 = arith.constant 0 : index
    %2 = vector.load %arg3[%c0_2, %c0_3] : memref<192x128xbf16, #tpu.memory_space<vmem>>, vector<192x128xbf16>
    %cst = arith.constant dense<0.000000e+00> : vector<17x128xf32>
    %3 = tpu.matmul %1, %2, %cst {dimension_numbers = #tpu.dot_dimension_numbers<[1], [0], [0], [1], [0, 0, 1, 1], [], []>} : vector<17x192xbf16>, vector<192x128xbf16>, vector<17x128xf32> -> vector<17x128xf32>
    %c0_4 = arith.constant 0 : index
    %c0_5 = arith.constant 0 : index
    %4 = vector.load %arg4[%c0_4, %c0_5] : memref<17x128xf32, #tpu.memory_space<vmem>>, vector<17x128xf32>
    %5 = arith.addf %3, %4 : vector<17x128xf32>
    %c0_6 = arith.constant 0 : index
    %c0_7 = arith.constant 0 : index
    %c0_8 = arith.constant 0 : index
    %6 = vector.load %arg5[%c0_6, %c0_7, %c0_8] : memref<1x17x128xf32, #tpu.memory_space<vmem>>, vector<1x17x128xf32>
    %7 = vector.shape_cast %6 : vector<1x17x128xf32> to vector<17x128xf32>
    %8 = vector.shape_cast %5 : vector<17x128xf32> to vector<1x17x128xf32>
    tpu.vector_store %arg5[%c0_6, %c0_7, %c0_8], %8 {strides = array<i32>} : memref<1x17x128xf32, #tpu.memory_space<vmem>>, vector<1x17x128xf32>,
    return
  }
  func.func @transform_0(%arg0: i32, %arg1: i32) -> (i32, i32, i32) {
    %c0_i32 = arith.constant 0 : i32
    %c0_i32_0 = arith.constant 0 : i32
    return %arg1, %arg0, %c0_i32 : i32, i32, i32
  }
  func.func @transform_1(%arg0: i32, %arg1: i32) -> (i32, i32) {
    %c0_i32 = arith.constant 0 : i32
    %c0_i32_0 = arith.constant 0 : i32
    %c0_i32_1 = arith.constant 0 : i32
    return %c0_i32, %c0_i32_0 : i32, i32
  }
  func.func @transform_2(%arg0: i32, %arg1: i32) -> (i32, i32) {
    %c0_i32 = arith.constant 0 : i32
    %c0_i32_0 = arith.constant 0 : i32
    return %arg0, %c0_i32 : i32, i32
  }
  func.func @transform_3(%arg0: i32, %arg1: i32) -> (i32, i32, i32) {
    %c0_i32 = arith.constant 0 : i32
    %c0_i32_0 = arith.constant 0 : i32
    return %arg1, %arg0, %c0_i32 : i32, i32, i32
  }
}

module attributes {stable_mosaic.version = 11 : i64} {
  func.func @_clip_embed_kernel(%arg0: i32, %arg1: i32, %arg2: memref<1x17x192xbf16, #tpu.memory_space<vmem>>, %arg3: memref<192x128xbf16, #tpu.memory_space<vmem>>, %arg4: memref<17x128xf32, #tpu.memory_space<vmem>>, %arg5: memref<1x17x128xf32, #tpu.memory_space<vmem>>) attributes {dimension_semantics = [#tpu.dimension_semantics<parallel>, #tpu.dimension_semantics<parallel>], iteration_bounds = array<i64: 1, 2>, scalar_prefetch = 0 : i64, scratch_operands = 0 : i64, tpu.core_type = #tpu.core_type<tc>, window_params = [{transform_indices = @transform_0, window_bounds = array<i64: 1, 17, 192>}, {pipeline_mode = #tpu.pipeline_mode<synchronous>, transform_indices = @transform_1, window_bounds = array<i64: 192, 128>}, {transform_indices = @transform_2, window_bounds = array<i64: 17, 128>}, {transform_indices = @transform_3, window_bounds = array<i64: 1, 17, 128>}]} {
    %c0 = arith.constant 0 : index
    %c0_0 = arith.constant 0 : index
    %c0_1 = arith.constant 0 : index
    %0 = vector.load %arg2[%c0, %c0_0, %c0_1] : memref<1x17x192xbf16, #tpu.memory_space<vmem>>, vector<1x17x192xbf16>
    %1 = vector.shape_cast %0 : vector<1x17x192xbf16> to vector<17x192xbf16>
    %c0_2 = arith.constant 0 : index
    %c0_3 = arith.constant 0 : index
    %2 = vector.load %arg3[%c0_2, %c0_3] : memref<192x128xbf16, #tpu.memory_space<vmem>>, vector<192x128xbf16>
    %cst = arith.constant dense<0.000000e+00> : vector<17x128xf32>
    %3 = tpu.matmul %1, %2, %cst {dimension_numbers = #tpu.dot_dimension_numbers<[1], [0], [0], [1], [0, 0, 1, 1], [], []>} : vector<17x192xbf16>, vector<192x128xbf16>, vector<17x128xf32> -> vector<17x128xf32>
    %c0_4 = arith.constant 0 : index
    %c0_5 = arith.constant 0 : index
    %4 = vector.load %arg4[%c0_4, %c0_5] : memref<17x128xf32, #tpu.memory_space<vmem>>, vector<17x128xf32>
    %5 = arith.addf %3, %4 : vector<17x128xf32>
    %c0_6 = arith.constant 0 : index
    %c0_7 = arith.constant 0 : index
    %c0_8 = arith.constant 0 : index
    %6 = vector.load %arg5[%c0_6, %c0_7, %c0_8] : memref<1x17x128xf32, #tpu.memory_space<vmem>>, vector<1x17x128xf32>
    %7 = vector.shape_cast %6 : vector<1x17x128xf32> to vector<17x128xf32>
    %8 = vector.shape_cast %5 : vector<17x128xf32> to vector<1x17x128xf32>
    tpu.vector_store %arg5[%c0_6, %c0_7, %c0_8], %8 {strides = array<i32>} : memref<1x17x128xf32, #tpu.memory_space<vmem>>, vector<1x17x128xf32>,
    return
  }
  func.func @transform_0(%arg0: i32, %arg1: i32) -> (i32, i32, i32) {
    %c0_i32 = arith.constant 0 : i32
    %c0_i32_0 = arith.constant 0 : i32
    return %arg1, %arg0, %c0_i32 : i32, i32, i32
  }
  func.func @transform_1(%arg0: i32, %arg1: i32) -> (i32, i32) {
    %c0_i32 = arith.constant 0 : i32
    %c0_i32_0 = arith.constant 0 : i32
    %c0_i32_1 = arith.constant 0 : i32
    return %c0_i32, %c0_i32_0 : i32, i32
  }
  func.func @transform_2(%arg0: i32, %arg1: i32) -> (i32, i32) {
    %c0_i32 = arith.constant 0 : i32
    %c0_i32_0 = arith.constant 0 : i32
    return %arg0, %c0_i32 : i32, i32
  }
  func.func @transform_3(%arg0: i32, %arg1: i32) -> (i32, i32, i32) {
    %c0_i32 = arith.constant 0 : i32
    %c0_i32_0 = arith.constant 0 : i32
    return %arg1, %arg0, %c0_i32 : i32, i32, i32
  }
}

</mosaic_0001>

<llo_original>
// kernel: tpu_custom_call.1
$region0: #{tpu_custom_call.1}
  #allocation0 [shape = 'u32[]', space=smem, size = 0x4, offset = 0x4, fixed_abs, tag = 'smem constant byte address 0x4 - core index']
  #allocation1 [shape = 'u32[144,128]{1,0:T(1,128)}', space=vmem, size = 0x12000, scoped, tag = 'internal scratch']
  %s0 = inlined_call_operand.vmem [shape: bf16[2,17,192], index: 0, kind: input, shape index: {}]
  %s1 = inlined_call_operand.hbm [shape: bf16[192,128], index: 1, kind: input, shape index: {}]
  %s2 = inlined_call_operand.vmem [shape: f32[17,128], index: 2, kind: input, shape index: {}]
  %s3 = inlined_call_operand.vmem [shape: f32[2,17,128], index: 3, kind: output, shape index: {}]
  %s4 = sld [smem:[#allocation0]]
  $region49: #{tpu_custom_call.1} parent=0
    _
  %s6 = ssub.s32 1, %s4
  %s7 = scalar_select 0, %s6, %s4
  $region1: #{tpu_custom_call.1} parent=0
    #allocation2 [shape = 'u8[49152]{0}', space=vmem, size = 0xc000, scoped, tag = 'input window, operand 1, single buffered']
    #allocation3 [shape = 's32[2]{0}', space=sflag, size = 0x8, scoped, tag = 'scoped memory for tpu_custom_call.1']
    %8 = vsyncpa [#allocation3], 0
    loop: start=0, step=1, limit=4
    $region2: #{tpu_custom_call.1} parent=1 // loop_pre_header
      _
    $region3: #{tpu_custom_call.1} parent=1 // loop_header
      %s10 = sphi 0, %s14
      %p11 = scmp.ge.s32.totalorder %s10, 4
      %s17 = sphi 0, %s29
      %s18 = sphi 0, %s25
      %s19 = sphi 0, %s17
      %s20 = sphi 0, %s18
      %s21 = sphi 0, %s19
      %s22 = sphi 0, %s20
      %s34 = sphi 0, %s36
      %s37 = sphi 0, %s34
      %s38 = sphi 0, %s37
      %s54 = sphi 0, %s38
      %s58 = sphi 0, %s58
      %s60 = sphi 0, %s58
      %s61 = sphi 0, %s60
      %s75 = sphi 0, %s61
      %s81 = sphi 0, %s83
      %s84 = sphi 0, %s81
      %s85 = sphi 0, %s84
      %s101 = sphi 0, %s85
      %s109 = sphi 0, %s111
      %s112 = sphi 0, %s109
      %s113 = sphi 0, %s112
      %s129 = sphi 0, %s113
    $region4: #{tpu_custom_call.1} parent=1 // loop_header_branch
      %13 = sbr.rel (%p11) target = $region8
    $region5: #{tpu_custom_call.1} parent=1 // loop_body
      %s15 = ssub.s32 %s10, 1
      %s16 = ssub.s32 %s10, 2
      %s23 = sadd.s32 1, %s18
      %p24 = scmp.ge.s32.totalorder %s23, 2
      %s25 = scalar_select %p24, 0, %s23
      %s26 = sadd.s32 1, %s17
      %s27 = scalar_select %p24, %s26, %s17
      %p28 = scmp.ge.s32.totalorder %s27, 1
      %s29 = scalar_select %p28, 0, %s27
      %s30 = ssub.s32 %s18, %s25
      %s31 = ssub.s32 %s17, %s29
      %s32 = sor.u32 %s30, %s31
      %p33 = scmp.eq.s32.totalorder %s32, 0
      %s35 = sadd.s32 %s34, 1
      %s36 = scalar_select %p33, %s34, %s35
      %p39 = pneg %p33
      %p40 = scmp.eq.s32.totalorder %s10, 1
      %p41 = por %p39, %p40
      %p42 = scmp.ne.s32.totalorder %s34, %s37
      %p43 = scmp.eq.s32.totalorder %s10, 0
      %p44 = por %p42, %p43
      %p45 = scmp.ne.s32.totalorder %s34, %s37
      %p46 = scmp.eq.s32.totalorder %s15, 1
      %p47 = por %p45, %p46
      %p48 = scmp.ne.s32.totalorder %s37, %s38
      %p49 = scmp.eq.s32.totalorder %s15, 0
      %p50 = por %p48, %p49
      %p51 = scmp.ne.s32.totalorder %s37, %s38
      %p52 = scmp.eq.s32.totalorder %s16, 1
      %p53 = por %p51, %p52
      %p55 = scmp.ne.s32.totalorder %s38, %s54
      %p56 = scmp.eq.s32.totalorder %s16, 0
      %p57 = por %p55, %p56
      %s59 = sadd.s32 %s58, 1
      %p62 = scmp.eq.s32.totalorder %s10, 1
      %p63 = scmp.ne.s32.totalorder %s58, %s60
      %p64 = scmp.eq.s32.totalorder %s10, 0
      %p65 = por %p63, %p64
      %p66 = scmp.ne.s32.totalorder %s58, %s60
      %p67 = scmp.eq.s32.totalorder %s15, 1
      %p68 = por %p66, %p67
      %p69 = scmp.ne.s32.totalorder %s60, %s61
      %p70 = scmp.eq.s32.totalorder %s15, 0
      %p71 = por %p69, %p70
      %p72 = scmp.ne.s32.totalorder %s60, %s61
      %p73 = scmp.eq.s32.totalorder %s16, 1
      %p74 = por %p72, %p73
      %p76 = scmp.ne.s32.totalorder %s61, %s75
      %p77 = scmp.eq.s32.totalorder %s16, 0
      %p78 = por %p76, %p77
      %s79 = ssub.s32 %s17, %s29
      %p80 = scmp.eq.s32.totalorder %s79, 0
      %s82 = sadd.s32 %s81, 1
      %s83 = scalar_select %p80, %s81, %s82
      %p86 = pneg %p80
      %p87 = scmp.eq.s32.totalorder %s10, 1
      %p88 = por %p86, %p87
      %p89 = scmp.ne.s32.totalorder %s81, %s84
      %p90 = scmp.eq.s32.totalorder %s10, 0
      %p91 = por %p89, %p90
      %p92 = scmp.ne.s32.totalorder %s81, %s84
      %p93 = scmp.eq.s32.totalorder %s15, 1
      %p94 = por %p92, %p93
      %p95 = scmp.ne.s32.totalorder %s84, %s85
      %p96 = scmp.eq.s32.totalorder %s15, 0
      %p97 = por %p95, %p96
      %p98 = scmp.ne.s32.totalorder %s84, %s85
      %p99 = scmp.eq.s32.totalorder %s16, 1
      %p100 = por %p98, %p99
      %p102 = scmp.ne.s32.totalorder %s85, %s101
      %p103 = scmp.eq.s32.totalorder %s16, 0
      %p104 = por %p102, %p103
      %s105 = ssub.s32 %s18, %s25
      %s106 = ssub.s32 %s17, %s29
      %s107 = sor.u32 %s105, %s106
      %p108 = scmp.eq.s32.totalorder %s107, 0
      %s110 = sadd.s32 %s109, 1
      %s111 = scalar_select %p108, %s109, %s110
      %p114 = pneg %p108
      %p115 = scmp.eq.s32.totalorder %s10, 1
      %p116 = por %p114, %p115
      %p117 = scmp.ne.s32.totalorder %s109, %s112
      %p118 = scmp.eq.s32.totalorder %s10, 0
      %p119 = por %p117, %p118
      %p120 = scmp.ne.s32.totalorder %s109, %s112
      %p121 = scmp.eq.s32.totalorder %s15, 1
      %p122 = por %p120, %p121
      %p123 = scmp.ne.s32.totalorder %s112, %s113
      %p124 = scmp.eq.s32.totalorder %s15, 0
      %p125 = por %p123, %p124
      %p126 = scmp.ne.s32.totalorder %s112, %s113
      %p127 = scmp.eq.s32.totalorder %s16, 1
      %p128 = por %p126, %p127
      %p130 = scmp.ne.s32.totalorder %s113, %s129
      %p131 = scmp.eq.s32.totalorder %s16, 0
      %p132 = por %p130, %p131
      %p133 = scmp.le.s32.totalorder 1, %s10
      %p134 = scmp.lt.s32.totalorder %s10, 3
      %p135 = pnand %p133, %p134
      %p136 = pneg %p135
      // Predicated region
      $region9: #{tpu_custom_call.1} parent=5 // pred_check
        _
      $region10: #{tpu_custom_call.1} parent=5 // pred_check_branch
        %138 = sbr.rel (%p135) target = $region12
      $region11: #{tpu_custom_call.1} parent=5 // pred_region
        %s139 = ssub.s32 %s10, 1
        // Predicated region
        $region13: #{tpu_custom_call.1} parent=11 // pred_check
          %p140 = pneg %p71
        $region14: #{tpu_custom_call.1} parent=11 // pred_check_branch
          %142 = sbr.rel (%p140) target = $region16
        $region15: #{tpu_custom_call.1} parent=11 // pred_region
          %s144 = ssub.s32 1536, 1536
          %145 = vsyncadd [#allocation3], %s144
          %s146 = sshll.u32 [#allocation2], 4
          %s147 = int_to_ptr.vmem [resolvable:$true] %s146
          %152 = dma.hbm_to_vmem [thread:$0]  %s1, 1536, %s147, [#allocation3], 64, 64, 4
        $region16: #{tpu_custom_call.1} parent=11 // pred_fallthru
          _
        // Predicated region
        $region17: #{tpu_custom_call.1} parent=11 // pred_check
          %p153 = pneg %p97
        $region18: #{tpu_custom_call.1} parent=11 // pred_check_branch
          %155 = sbr.rel (%p153) target = $region20
        $region19: #{tpu_custom_call.1} parent=11 // pred_region
          %s156 = smul.u32 3, %s19
          %p157 = scmp.lt.s32.totalorder %s156, 2
          %s158 = scalar_select %p157, %s156, 2
          %s159 = smul.addr %s158, 8
          %s160 = scalar_lea.vmem %s2, %s159
          %s161 = smul.u32 3, %s19
        $region20: #{tpu_custom_call.1} parent=11 // pred_fallthru
          _
      $region12: #{tpu_custom_call.1} parent=5 // pred_fallthru
        _
      %p162 = scmp.lt.s32.totalorder %s10, 2
      // Predicated region
      $region21: #{tpu_custom_call.1} parent=5 // pred_check
        %p163 = pneg %p162
      $region22: #{tpu_custom_call.1} parent=5 // pred_check_branch
        %165 = sbr.rel (%p163) target = $region24
      $region23: #{tpu_custom_call.1} parent=5 // pred_region
        // Predicated region
        $region25: #{tpu_custom_call.1} parent=23 // pred_check
          %p166 = pneg %p44
        $region26: #{tpu_custom_call.1} parent=23 // pred_check_branch
          %168 = sbr.rel (%p166) target = $region28
        $region27: #{tpu_custom_call.1} parent=23 // pred_region
          %s169 = smul.u32 3, %s17
          %p170 = scmp.lt.s32.totalorder %s18, 1
          %s171 = scalar_select %p170, %s18, 1
          %p172 = scmp.lt.s32.totalorder %s169, 2
          %s173 = scalar_select %p172, %s169, 2
          %s174 = smul.addr %s173, 2
          %s175 = smul.addr %s171, 6
          %s176 = sadd.s32 %s174, %s175
          %s177 = smul.addr %s176, 4
          %s178 = scalar_lea.vmem %s0, %s177
          %s179 = smul.u32 3, %s17
        $region28: #{tpu_custom_call.1} parent=23 // pred_fallthru
          _
      $region24: #{tpu_custom_call.1} parent=5 // pred_fallthru
        _
      %p180 = scmp.le.s32.totalorder 1, %s10
      %p181 = scmp.lt.s32.totalorder %s10, 3
      %p182 = pnand %p180, %p181
      %p183 = pneg %p182
      // Predicated region
      $region29: #{tpu_custom_call.1} parent=5 // pred_check
        _
      $region30: #{tpu_custom_call.1} parent=5 // pred_check_branch
        %185 = sbr.rel (%p182) target = $region32
      $region31: #{tpu_custom_call.1} parent=5 // pred_region
        %s186 = ssub.s32 %s10, 1
        // Predicated region
        $region33: #{tpu_custom_call.1} parent=31 // pred_check
          %p187 = pneg %p71
        $region34: #{tpu_custom_call.1} parent=31 // pred_check_branch
          %189 = sbr.rel (%p187) target = $region36
        $region35: #{tpu_custom_call.1} parent=31 // pred_region
          %190 = dma.done [#allocation3], 1536
        $region36: #{tpu_custom_call.1} parent=31 // pred_fallthru
          _
        %s191 = smul.u32 3, %s19
        %p192 = scmp.lt.s32.totalorder %s20, 1
        %s193 = scalar_select %p192, %s20, 1
        %p194 = scmp.lt.s32.totalorder %s191, 2
        %s195 = scalar_select %p194, %s191, 2
        %s196 = smul.addr %s195, 2
        %s197 = smul.addr %s193, 6
        %s198 = sadd.s32 %s196, %s197
        %s199 = smul.addr %s198, 4
        %s200 = scalar_lea.vmem %s0, %s199
        %p201 = pneg %p50
        %p202 = pneg %p47
        %p203 = pneg %p71
        %p204 = pneg %p68
        %s205 = smul.u32 3, %s19
        %p206 = scmp.lt.s32.totalorder %s205, 2
        %s207 = scalar_select %p206, %s205, 2
        %s208 = smul.addr %s207, 8
        %s209 = scalar_lea.vmem %s2, %s208
        %p210 = pneg %p97
        %p211 = pneg %p94
        %p212 = pneg %p125
        %p213 = pneg %p122
        %s214 = smul.u32 3, %s19
        %p215 = scmp.lt.s32.totalorder %s20, 1
        %s216 = scalar_select %p215, %s20, 1
        %p217 = scmp.lt.s32.totalorder %s214, 2
        %s218 = scalar_select %p217, %s214, 2
        %s219 = smul.addr %s216, 3
        %s220 = sadd.s32 %s218, %s219
        %s221 = smul.addr %s220, 8
        %s222 = scalar_lea.vmem %s3, %s221
        %s223 = smul.u32 3, %s19
        %p224 = scmp.lt.s32.totalorder %s20, 1
        %s225 = scalar_select %p224, %s20, 1
        %p226 = scmp.lt.s32.totalorder %s223, 2
        %s227 = scalar_select %p226, %s223, 2
        %s228 = smul.addr %s227, 2
        %s229 = smul.addr %s225, 6
        %s230 = sadd.s32 %s228, %s229
        %s231 = smul.addr %s230, 4
        %s232 = scalar_lea.vmem %s0, %s231
        %s233 = smul.u32 3, %s19
        %s234 = smul.u32 3, %s19
        %p235 = scmp.lt.s32.totalorder %s234, 2
        %s236 = scalar_select %p235, %s234, 2
        %s237 = smul.addr %s236, 8
        %s238 = scalar_lea.vmem %s2, %s237
        %s239 = smul.u32 3, %s19
        %s240 = smul.u32 3, %s19
        %p241 = scmp.lt.s32.totalorder %s20, 1
        %s242 = scalar_select %p241, %s20, 1
        %p243 = scmp.lt.s32.totalorder %s240, 2
        %s244 = scalar_select %p243, %s240, 2
        %s245 = smul.addr %s242, 3
        %s246 = sadd.s32 %s244, %s245
        %s247 = smul.addr %s246, 8
        %s248 = scalar_lea.vmem %s3, %s247
        %s249 = smul.u32 3, %s19
        %v251 = vld [vmem:[%s232] sm:$0xff]
        %v252 = vld [vmem:[%s232 + $0x8] sm:$0xff]
        %v253 = vld [vmem:[%s232 + $0x10] sm:$0x11]
        %v254 = vld [vmem:[#allocation2] sm:$0xf]
        %v255 = vld [vmem:[#allocation2 + $0x4] sm:$0xf]
        %v256 = vld [vmem:[#allocation2 + $0x8] sm:$0xf]
        %v257 = vld [vmem:[#allocation2 + $0xc] sm:$0xf]
        %v258 = vld [vmem:[#allocation2 + $0x10] sm:$0xf]
        %v259 = vld [vmem:[#allocation2 + $0x14] sm:$0xf]
        %v260 = vld [vmem:[#allocation2 + $0x18] sm:$0xf]
        %v261 = vld [vmem:[#allocation2 + $0x1c] sm:$0xf]
        %v262 = vld [vmem:[#allocation2 + $0x20] sm:$0xf]
        %v263 = vld [vmem:[#allocation2 + $0x24] sm:$0xf]
        %v264 = vld [vmem:[#allocation2 + $0x28] sm:$0xf]
        %v265 = vld [vmem:[#allocation2 + $0x2c] sm:$0xf]
        %v266 = vld [vmem:[#allocation2 + $0x30] sm:$0xf]
        %v267 = vld [vmem:[#allocation2 + $0x34] sm:$0xf]
        %v268 = vld [vmem:[#allocation2 + $0x38] sm:$0xf]
        %v269 = vld [vmem:[#allocation2 + $0x3c] sm:$0xf]
        %v270 = vld [vmem:[#allocation2 + $0x40] sm:$0xf]
        %v271 = vld [vmem:[#allocation2 + $0x44] sm:$0xf]
        %v272 = vld [vmem:[#allocation2 + $0x48] sm:$0xf]
        %v273 = vld [vmem:[#allocation2 + $0x4c] sm:$0xf]
        %v274 = vld [vmem:[#allocation2 + $0x50] sm:$0xf]
        %v275 = vld [vmem:[#allocation2 + $0x54] sm:$0xf]
        %v276 = vld [vmem:[#allocation2 + $0x58] sm:$0xf]
        %v277 = vld [vmem:[#allocation2 + $0x5c] sm:$0xf]
        %v278 = vld [vmem:[%s238] sm:$0xff]
        %v279 = vld [vmem:[%s238 + $0x8] sm:$0xff]
        %v280 = vld [vmem:[%s238 + $0x10] sm:$0x1]
        %v284 = vunpack.c.l.b16 %v251
        %v285 = vunpack.c.h.b16 %v251
        %v286 = vunpack.c.l.b16 %v252
        %v287 = vunpack.c.h.b16 %v252
        %v288 = vunpack.c.l.b16 %v253
        %v289 = vunpack.c.h.b16 %v253
        %v290 = vpack.c.b16 %v286, %v284
        %v291 = vpack.c.b16 %v287, %v285
        %v292 = vpack.c.b16 %v288, %v288
        %v293 = vpack.c.b16 %v289, %v289
        %v320 = vunpack.c.l.b16 %v254
        %v321 = vunpack.c.l.b16 %v255
        %v322 = vunpack.c.l.b16 %v256
        %v323 = vunpack.c.l.b16 %v257
        %v324 = vunpack.c.l.b16 %v258
        %v325 = vunpack.c.l.b16 %v259
        %v326 = vunpack.c.l.b16 %v260
        %v327 = vunpack.c.l.b16 %v261
        %v328 = vunpack.c.l.b16 %v262
        %v329 = vunpack.c.l.b16 %v263
        %v330 = vunpack.c.l.b16 %v264
        %v331 = vunpack.c.l.b16 %v265
        %v332 = vunpack.c.l.b16 %v266
        %v333 = vunpack.c.l.b16 %v267
        %v334 = vunpack.c.l.b16 %v268
        %v335 = vunpack.c.l.b16 %v269
        %v336 = vunpack.c.l.b16 %v270
        %v337 = vunpack.c.l.b16 %v271
        %v338 = vunpack.c.l.b16 %v272
        %v339 = vunpack.c.l.b16 %v273
        %v340 = vunpack.c.l.b16 %v274
        %v341 = vunpack.c.l.b16 %v275
        %v342 = vunpack.c.l.b16 %v276
        %v343 = vunpack.c.l.b16 %v277
        %v344 = vpack.c.b16 %v321, %v320
        %v345 = vpack.c.b16 %v323, %v322
        %v346 = vpack.c.b16 %v325, %v324
        %v347 = vpack.c.b16 %v327, %v326
        %v348 = vpack.c.b16 %v329, %v328
        %v349 = vpack.c.b16 %v331, %v330
        %v350 = vpack.c.b16 %v333, %v332
        %v351 = vpack.c.b16 %v335, %v334
        %v352 = vpack.c.b16 %v337, %v336
        %v353 = vpack.c.b16 %v339, %v338
        %v354 = vpack.c.b16 %v341, %v340
        %v355 = vpack.c.b16 %v343, %v342
        %vm368 = vcmask 523264
        %v370 = vsel %vm368, %v291, 0
        %v373 = vsel %vm368, %v293, 0
        %375 = vmatprep.subr.bf16.mxu0 0
        %376 = vmatpush1.bf16.msra.mxu0 %v351
        %377 = vmatprep.subr.bf16.mxu0 0
        %378 = vmatpush1.bf16.msra.mxu0 %v350
        %379 = vmatprep.subr.bf16.mxu0 0
        %380 = vmatpush1.bf16.msra.mxu0 %v349
        %381 = vmatprep.subr.bf16.mxu0 0
        %382 = vmatpush1.bf16.msra.mxu0 %v348
        %383 = vmatprep.subr.bf16.mxu0 0
        %384 = vmatpush1.bf16.msra.mxu0 %v347
        %385 = vmatprep.subr.bf16.mxu0 0
        %386 = vmatpush1.bf16.msra.mxu0 %v346
        %387 = vmatprep.subr.bf16.mxu0 0
        %388 = vmatpush1.bf16.msra.mxu0 %v345
        %389 = vmatprep.subr.bf16.mxu0 0
        %390 = vmatpush1.bf16.msra.mxu0 %v344
        %391 = vmatprep.subr.bf16.mxu0 0
        %392 = vmatpush2.bf16.msra.mxu0 0
        %393 = vmatprep.subr.bf16.mxu0 0
        %394 = vmatpush2.bf16.msra.mxu0 0
        %395 = vmatprep.subr.bf16.mxu0 0
        %396 = vmatpush2.bf16.msra.mxu0 0
        %397 = vmatprep.subr.bf16.mxu0 0
        %398 = vmatpush2.bf16.msra.mxu0 0
        %399 = vmatprep.subr.bf16.mxu0 0
        %400 = vmatpush2.bf16.msra.mxu0 %v355
        %401 = vmatprep.subr.bf16.mxu0 0
        %402 = vmatpush2.bf16.msra.mxu0 %v354
        %403 = vmatprep.subr.bf16.mxu0 0
        %404 = vmatpush2.bf16.msra.mxu0 %v353
        %405 = vmatprep.subr.bf16.mxu0 0
        %406 = vmatpush2.bf16.msra.mxu0 %v352
        %407 = vmatprep.mubr.bf16.mxu0 %v370
        %408 = vmatmul.mubr.bf16.gmra.mxu0 %v290
        %v409 = vpop.f32.mrf.mxu0
        %v410 = vadd.f32 %v278, %v409
        %v411 = vpop.f32.mrf.mxu0
        %v412 = vpop.f32.mrf.mxu0
        %v413 = vadd.f32 %v279, %v412
        %v414 = vpop.f32.mrf.mxu0
        %415 = vmatprep.mubr.bf16.mxu0 %v373
        %416 = vmatmul.mubr.bf16.gmra.mxu0 %v292
        %v417 = vpop.f32.mrf.mxu0
        %v418 = vadd.f32 %v280, %v417
        %v419 = vpop.f32.mrf.mxu0
        %v420 = vpop.f32.mrf.mxu0
        %v421 = vpop.f32.mrf.mxu0
        %422 = vdwg.mxu0
        %423 = vst [vmem:[%s248] sm:$0xff] %v410
        %424 = vst [vmem:[%s248 + $0x8] sm:$0xff] %v413
        %425 = vst [vmem:[%s248 + $0x10] sm:$0x1] %v418
        %s426 = smul.u32 3, %s19
        %p427 = scmp.lt.s32.totalorder %s20, 1
        %s428 = scalar_select %p427, %s20, 1
        %p429 = scmp.lt.s32.totalorder %s426, 2
        %s430 = scalar_select %p429, %s426, 2
        %s431 = smul.addr %s428, 3
        %s432 = sadd.s32 %s430, %s431
        %s433 = smul.addr %s432, 8
        %s434 = scalar_lea.vmem %s3, %s433
        // Predicated region
        $region37: #{tpu_custom_call.1} parent=31 // pred_check
          %p435 = pneg %p122
        $region38: #{tpu_custom_call.1} parent=31 // pred_check_branch
          %437 = sbr.rel (%p435) target = $region40
        $region39: #{tpu_custom_call.1} parent=31 // pred_region
          %s438 = smul.u32 3, %s19
        $region40: #{tpu_custom_call.1} parent=31 // pred_fallthru
          _
      $region32: #{tpu_custom_call.1} parent=5 // pred_fallthru
        _
      %p439 = scmp.le.s32.totalorder 2, %s10
      // Predicated region
      $region41: #{tpu_custom_call.1} parent=5 // pred_check
        %p440 = pneg %p439
      $region42: #{tpu_custom_call.1} parent=5 // pred_check_branch
        %442 = sbr.rel (%p440) target = $region44
      $region43: #{tpu_custom_call.1} parent=5 // pred_region
        %s443 = ssub.s32 %s10, 2
        // Predicated region
        $region45: #{tpu_custom_call.1} parent=43 // pred_check
          %p444 = pneg %p128
        $region46: #{tpu_custom_call.1} parent=43 // pred_check_branch
          %446 = sbr.rel (%p444) target = $region48
        $region47: #{tpu_custom_call.1} parent=43 // pred_region
          %s447 = smul.u32 3, %s21
          %p448 = scmp.lt.s32.totalorder %s22, 1
          %s449 = scalar_select %p448, %s22, 1
          %p450 = scmp.lt.s32.totalorder %s447, 2
          %s451 = scalar_select %p450, %s447, 2
          %s452 = smul.addr %s449, 3
          %s453 = sadd.s32 %s451, %s452
          %s454 = smul.addr %s453, 8
          %s455 = scalar_lea.vmem %s3, %s454
        $region48: #{tpu_custom_call.1} parent=43 // pred_fallthru
          _
      $region44: #{tpu_custom_call.1} parent=5 // pred_fallthru
        _
    $region6: #{tpu_custom_call.1} parent=1 // loop_footer
      %s14 = sadd.s32 1, %s10
    $region7: #{tpu_custom_call.1} parent=1 // loop_footer_branch
      %9 = sbr.rel target = $region3
    $region8: #{tpu_custom_call.1} parent=1 // loop_exit
      _
    %456 = vsyncpa [#allocation3], 1
    %s457 = scalar_lea.sflag [#allocation3], 1
    %458 = vsyncpa %s457, 1

// kernel: tpu_custom_call.1
$region0: #{tpu_custom_call.1}
  #allocation0 [shape = 'u32[]', space=smem, size = 0x4, offset = 0x4, fixed_abs, tag = 'smem constant byte address 0x4 - core index']
  #allocation1 [shape = 'u32[144,128]{1,0:T(1,128)}', space=vmem, size = 0x12000, scoped, tag = 'internal scratch']
  %s0 = inlined_call_operand.vmem [shape: bf16[2,17,192], index: 0, kind: input, shape index: {}]
  %s1 = inlined_call_operand.hbm [shape: bf16[192,128], index: 1, kind: input, shape index: {}]
  %s2 = inlined_call_operand.vmem [shape: f32[17,128], index: 2, kind: input, shape index: {}]
  %s3 = inlined_call_operand.vmem [shape: f32[2,17,128], index: 3, kind: output, shape index: {}]
  %s4 = sld [smem:[#allocation0]]
  $region49: #{tpu_custom_call.1} parent=0
    _
  %s6 = ssub.s32 1, %s4
  %s7 = scalar_select 0, %s6, %s4
  $region1: #{tpu_custom_call.1} parent=0
    #allocation2 [shape = 'u8[49152]{0}', space=vmem, size = 0xc000, scoped, tag = 'input window, operand 1, single buffered']
    #allocation3 [shape = 's32[2]{0}', space=sflag, size = 0x8, scoped, tag = 'scoped memory for tpu_custom_call.1']
    %8 = vsyncpa [#allocation3], 0
    loop: start=0, step=1, limit=4
    $region2: #{tpu_custom_call.1} parent=1 // loop_pre_header
      _
    $region3: #{tpu_custom_call.1} parent=1 // loop_header
      %s10 = sphi 0, %s14
      %p11 = scmp.ge.s32.totalorder %s10, 4
      %s17 = sphi 0, %s29
      %s18 = sphi 0, %s25
      %s19 = sphi 0, %s17
      %s20 = sphi 0, %s18
      %s21 = sphi 0, %s19
      %s22 = sphi 0, %s20
      %s34 = sphi 0, %s36
      %s37 = sphi 0, %s34
      %s38 = sphi 0, %s37
      %s54 = sphi 0, %s38
      %s58 = sphi 0, %s58
      %s60 = sphi 0, %s58
      %s61 = sphi 0, %s60
      %s75 = sphi 0, %s61
      %s81 = sphi 0, %s83
      %s84 = sphi 0, %s81
      %s85 = sphi 0, %s84
      %s101 = sphi 0, %s85
      %s109 = sphi 0, %s111
      %s112 = sphi 0, %s109
      %s113 = sphi 0, %s112
      %s129 = sphi 0, %s113
    $region4: #{tpu_custom_call.1} parent=1 // loop_header_branch
      %13 = sbr.rel (%p11) target = $region8
    $region5: #{tpu_custom_call.1} parent=1 // loop_body
      %s15 = ssub.s32 %s10, 1
      %s16 = ssub.s32 %s10, 2
      %s23 = sadd.s32 1, %s18
      %p24 = scmp.ge.s32.totalorder %s23, 2
      %s25 = scalar_select %p24, 0, %s23
      %s26 = sadd.s32 1, %s17
      %s27 = scalar_select %p24, %s26, %s17
      %p28 = scmp.ge.s32.totalorder %s27, 1
      %s29 = scalar_select %p28, 0, %s27
      %s30 = ssub.s32 %s18, %s25
      %s31 = ssub.s32 %s17, %s29
      %s32 = sor.u32 %s30, %s31
      %p33 = scmp.eq.s32.totalorder %s32, 0
      %s35 = sadd.s32 %s34, 1
      %s36 = scalar_select %p33, %s34, %s35
      %p39 = pneg %p33
      %p40 = scmp.eq.s32.totalorder %s10, 1
      %p41 = por %p39, %p40
      %p42 = scmp.ne.s32.totalorder %s34, %s37
      %p43 = scmp.eq.s32.totalorder %s10, 0
      %p44 = por %p42, %p43
      %p45 = scmp.ne.s32.totalorder %s34, %s37
      %p46 = scmp.eq.s32.totalorder %s15, 1
      %p47 = por %p45, %p46
      %p48 = scmp.ne.s32.totalorder %s37, %s38
      %p49 = scmp.eq.s32.totalorder %s15, 0
      %p50 = por %p48, %p49
      %p51 = scmp.ne.s32.totalorder %s37, %s38
      %p52 = scmp.eq.s32.totalorder %s16, 1
      %p53 = por %p51, %p52
      %p55 = scmp.ne.s32.totalorder %s38, %s54
      %p56 = scmp.eq.s32.totalorder %s16, 0
      %p57 = por %p55, %p56
      %s59 = sadd.s32 %s58, 1
      %p62 = scmp.eq.s32.totalorder %s10, 1
      %p63 = scmp.ne.s32.totalorder %s58, %s60
      %p64 = scmp.eq.s32.totalorder %s10, 0
      %p65 = por %p63, %p64
      %p66 = scmp.ne.s32.totalorder %s58, %s60
      %p67 = scmp.eq.s32.totalorder %s15, 1
      %p68 = por %p66, %p67
      %p69 = scmp.ne.s32.totalorder %s60, %s61
      %p70 = scmp.eq.s32.totalorder %s15, 0
      %p71 = por %p69, %p70
      %p72 = scmp.ne.s32.totalorder %s60, %s61
      %p73 = scmp.eq.s32.totalorder %s16, 1
      %p74 = por %p72, %p73
      %p76 = scmp.ne.s32.totalorder %s61, %s75
      %p77 = scmp.eq.s32.totalorder %s16, 0
      %p78 = por %p76, %p77
      %s79 = ssub.s32 %s17, %s29
      %p80 = scmp.eq.s32.totalorder %s79, 0
      %s82 = sadd.s32 %s81, 1
      %s83 = scalar_select %p80, %s81, %s82
      %p86 = pneg %p80
      %p87 = scmp.eq.s32.totalorder %s10, 1
      %p88 = por %p86, %p87
      %p89 = scmp.ne.s32.totalorder %s81, %s84
      %p90 = scmp.eq.s32.totalorder %s10, 0
      %p91 = por %p89, %p90
      %p92 = scmp.ne.s32.totalorder %s81, %s84
      %p93 = scmp.eq.s32.totalorder %s15, 1
      %p94 = por %p92, %p93
      %p95 = scmp.ne.s32.totalorder %s84, %s85
      %p96 = scmp.eq.s32.totalorder %s15, 0
      %p97 = por %p95, %p96
      %p98 = scmp.ne.s32.totalorder %s84, %s85
      %p99 = scmp.eq.s32.totalorder %s16, 1
      %p100 = por %p98, %p99
      %p102 = scmp.ne.s32.totalorder %s85, %s101
      %p103 = scmp.eq.s32.totalorder %s16, 0
      %p104 = por %p102, %p103
      %s105 = ssub.s32 %s18, %s25
      %s106 = ssub.s32 %s17, %s29
      %s107 = sor.u32 %s105, %s106
      %p108 = scmp.eq.s32.totalorder %s107, 0
      %s110 = sadd.s32 %s109, 1
      %s111 = scalar_select %p108, %s109, %s110
      %p114 = pneg %p108
      %p115 = scmp.eq.s32.totalorder %s10, 1
      %p116 = por %p114, %p115
      %p117 = scmp.ne.s32.totalorder %s109, %s112
      %p118 = scmp.eq.s32.totalorder %s10, 0
      %p119 = por %p117, %p118
      %p120 = scmp.ne.s32.totalorder %s109, %s112
      %p121 = scmp.eq.s32.totalorder %s15, 1
      %p122 = por %p120, %p121
      %p123 = scmp.ne.s32.totalorder %s112, %s113
      %p124 = scmp.eq.s32.totalorder %s15, 0
      %p125 = por %p123, %p124
      %p126 = scmp.ne.s32.totalorder %s112, %s113
      %p127 = scmp.eq.s32.totalorder %s16, 1
      %p128 = por %p126, %p127
      %p130 = scmp.ne.s32.totalorder %s113, %s129
      %p131 = scmp.eq.s32.totalorder %s16, 0
      %p132 = por %p130, %p131
      %p133 = scmp.le.s32.totalorder 1, %s10
      %p134 = scmp.lt.s32.totalorder %s10, 3
      %p135 = pnand %p133, %p134
      %p136 = pneg %p135
      // Predicated region
      $region9: #{tpu_custom_call.1} parent=5 // pred_check
        _
      $region10: #{tpu_custom_call.1} parent=5 // pred_check_branch
        %138 = sbr.rel (%p135) target = $region12
      $region11: #{tpu_custom_call.1} parent=5 // pred_region
        %s139 = ssub.s32 %s10, 1
        // Predicated region
        $region13: #{tpu_custom_call.1} parent=11 // pred_check
          %p140 = pneg %p71
        $region14: #{tpu_custom_call.1} parent=11 // pred_check_branch
          %142 = sbr.rel (%p140) target = $region16
        $region15: #{tpu_custom_call.1} parent=11 // pred_region
          %s144 = ssub.s32 1536, 1536
          %145 = vsyncadd [#allocation3], %s144
          %s146 = sshll.u32 [#allocation2], 4
          %s147 = int_to_ptr.vmem [resolvable:$true] %s146
          %152 = dma.hbm_to_vmem [thread:$0]  %s1, 1536, %s147, [#allocation3], 64, 64, 4
        $region16: #{tpu_custom_call.1} parent=11 // pred_fallthru
          _
        // Predicated region
        $region17: #{tpu_custom_call.1} parent=11 // pred_check
          %p153 = pneg %p97
        $region18: #{tpu_custom_call.1} parent=11 // pred_check_branch
          %155 = sbr.rel (%p153) target = $region20
        $region19: #{tpu_custom_call.1} parent=11 // pred_region
          %s156 = smul.u32 3, %s19
          %p157 = scmp.lt.s32.totalorder %s156, 2
          %s158 = scalar_select %p157, %s156, 2
          %s159 = smul.addr %s158, 8
          %s160 = scalar_lea.vmem %s2, %s159
          %s161 = smul.u32 3, %s19
        $region20: #{tpu_custom_call.1} parent=11 // pred_fallthru
          _
      $region12: #{tpu_custom_call.1} parent=5 // pred_fallthru
        _
      %p162 = scmp.lt.s32.totalorder %s10, 2
      // Predicated region
      $region21: #{tpu_custom_call.1} parent=5 // pred_check
        %p163 = pneg %p162
      $region22: #{tpu_custom_call.1} parent=5 // pred_check_branch
        %165 = sbr.rel (%p163) target = $region24
      $region23: #{tpu_custom_call.1} parent=5 // pred_region
        // Predicated region
        $region25: #{tpu_custom_call.1} parent=23 // pred_check
          %p166 = pneg %p44
        $region26: #{tpu_custom_call.1} parent=23 // pred_check_branch
          %168 = sbr.rel (%p166) target = $region28
        $region27: #{tpu_custom_call.1} parent=23 // pred_region
          %s169 = smul.u32 3, %s17
          %p170 = scmp.lt.s32.totalorder %s18, 1
          %s171 = scalar_select %p170, %s18, 1
          %p172 = scmp.lt.s32.totalorder %s169, 2
          %s173 = scalar_select %p172, %s169, 2
          %s174 = smul.addr %s173, 2
          %s175 = smul.addr %s171, 6
          %s176 = sadd.s32 %s174, %s175
          %s177 = smul.addr %s176, 4
          %s178 = scalar_lea.vmem %s0, %s177
          %s179 = smul.u32 3, %s17
        $region28: #{tpu_custom_call.1} parent=23 // pred_fallthru
          _
      $region24: #{tpu_custom_call.1} parent=5 // pred_fallthru
        _
      %p180 = scmp.le.s32.totalorder 1, %s10
      %p181 = scmp.lt.s32.totalorder %s10, 3
      %p182 = pnand %p180, %p181
      %p183 = pneg %p182
      // Predicated region
      $region29: #{tpu_custom_call.1} parent=5 // pred_check
        _
      $region30: #{tpu_custom_call.1} parent=5 // pred_check_branch
        %185 = sbr.rel (%p182) target = $region32
      $region31: #{tpu_custom_call.1} parent=5 // pred_region
        %s186 = ssub.s32 %s10, 1
        // Predicated region
        $region33: #{tpu_custom_call.1} parent=31 // pred_check
          %p187 = pneg %p71
        $region34: #{tpu_custom_call.1} parent=31 // pred_check_branch
          %189 = sbr.rel (%p187) target = $region36
        $region35: #{tpu_custom_call.1} parent=31 // pred_region
          %190 = dma.done [#allocation3], 1536
        $region36: #{tpu_custom_call.1} parent=31 // pred_fallthru
          _
        %s191 = smul.u32 3, %s19
        %p192 = scmp.lt.s32.totalorder %s20, 1
        %s193 = scalar_select %p192, %s20, 1
        %p194 = scmp.lt.s32.totalorder %s191, 2
        %s195 = scalar_select %p194, %s191, 2
        %s196 = smul.addr %s195, 2
        %s197 = smul.addr %s193, 6
        %s198 = sadd.s32 %s196, %s197
        %s199 = smul.addr %s198, 4
        %s200 = scalar_lea.vmem %s0, %s199
        %p201 = pneg %p50
        %p202 = pneg %p47
        %p203 = pneg %p71
        %p204 = pneg %p68
        %s205 = smul.u32 3, %s19
        %p206 = scmp.lt.s32.totalorder %s205, 2
        %s207 = scalar_select %p206, %s205, 2
        %s208 = smul.addr %s207, 8
        %s209 = scalar_lea.vmem %s2, %s208
        %p210 = pneg %p97
        %p211 = pneg %p94
        %p212 = pneg %p125
        %p213 = pneg %p122
        %s214 = smul.u32 3, %s19
        %p215 = scmp.lt.s32.totalorder %s20, 1
        %s216 = scalar_select %p215, %s20, 1
        %p217 = scmp.lt.s32.totalorder %s214, 2
        %s218 = scalar_select %p217, %s214, 2
        %s219 = smul.addr %s216, 3
        %s220 = sadd.s32 %s218, %s219
        %s221 = smul.addr %s220, 8
        %s222 = scalar_lea.vmem %s3, %s221
        %s223 = smul.u32 3, %s19
        %p224 = scmp.lt.s32.totalorder %s20, 1
        %s225 = scalar_select %p224, %s20, 1
        %p226 = scmp.lt.s32.totalorder %s223, 2
        %s227 = scalar_select %p226, %s223, 2
        %s228 = smul.addr %s227, 2
        %s229 = smul.addr %s225, 6
        %s230 = sadd.s32 %s228, %s229
        %s231 = smul.addr %s230, 4
        %s232 = scalar_lea.vmem %s0, %s231
        %s233 = smul.u32 3, %s19
        %s234 = smul.u32 3, %s19
        %p235 = scmp.lt.s32.totalorder %s234, 2
        %s236 = scalar_select %p235, %s234, 2
        %s237 = smul.addr %s236, 8
        %s238 = scalar_lea.vmem %s2, %s237
        %s239 = smul.u32 3, %s19
        %s240 = smul.u32 3, %s19
        %p241 = scmp.lt.s32.totalorder %s20, 1
        %s242 = scalar_select %p241, %s20, 1
        %p243 = scmp.lt.s32.totalorder %s240, 2
        %s244 = scalar_select %p243, %s240, 2
        %s245 = smul.addr %s242, 3
        %s246 = sadd.s32 %s244, %s245
        %s247 = smul.addr %s246, 8
        %s248 = scalar_lea.vmem %s3, %s247
        %s249 = smul.u32 3, %s19
        %v251 = vld [vmem:[%s232] sm:$0xff]
        %v252 = vld [vmem:[%s232 + $0x8] sm:$0xff]
        %v253 = vld [vmem:[%s232 + $0x10] sm:$0x11]
        %v254 = vld [vmem:[#allocation2] sm:$0xf]
        %v255 = vld [vmem:[#allocation2 + $0x4] sm:$0xf]
        %v256 = vld [vmem:[#allocation2 + $0x8] sm:$0xf]
        %v257 = vld [vmem:[#allocation2 + $0xc] sm:$0xf]
        %v258 = vld [vmem:[#allocation2 + $0x10] sm:$0xf]
        %v259 = vld [vmem:[#allocation2 + $0x14] sm:$0xf]
        %v260 = vld [vmem:[#allocation2 + $0x18] sm:$0xf]
        %v261 = vld [vmem:[#allocation2 + $0x1c] sm:$0xf]
        %v262 = vld [vmem:[#allocation2 + $0x20] sm:$0xf]
        %v263 = vld [vmem:[#allocation2 + $0x24] sm:$0xf]
        %v264 = vld [vmem:[#allocation2 + $0x28] sm:$0xf]
        %v265 = vld [vmem:[#allocation2 + $0x2c] sm:$0xf]
        %v266 = vld [vmem:[#allocation2 + $0x30] sm:$0xf]
        %v267 = vld [vmem:[#allocation2 + $0x34] sm:$0xf]
        %v268 = vld [vmem:[#allocation2 + $0x38] sm:$0xf]
        %v269 = vld [vmem:[#allocation2 + $0x3c] sm:$0xf]
        %v270 = vld [vmem:[#allocation2 + $0x40] sm:$0xf]
        %v271 = vld [vmem:[#allocation2 + $0x44] sm:$0xf]
        %v272 = vld [vmem:[#allocation2 + $0x48] sm:$0xf]
        %v273 = vld [vmem:[#allocation2 + $0x4c] sm:$0xf]
        %v274 = vld [vmem:[#allocation2 + $0x50] sm:$0xf]
        %v275 = vld [vmem:[#allocation2 + $0x54] sm:$0xf]
        %v276 = vld [vmem:[#allocation2 + $0x58] sm:$0xf]
        %v277 = vld [vmem:[#allocation2 + $0x5c] sm:$0xf]
        %v278 = vld [vmem:[%s238] sm:$0xff]
        %v279 = vld [vmem:[%s238 + $0x8] sm:$0xff]
        %v280 = vld [vmem:[%s238 + $0x10] sm:$0x1]
        %v284 = vunpack.c.l.b16 %v251
        %v285 = vunpack.c.h.b16 %v251
        %v286 = vunpack.c.l.b16 %v252
        %v287 = vunpack.c.h.b16 %v252
        %v288 = vunpack.c.l.b16 %v253
        %v289 = vunpack.c.h.b16 %v253
        %v290 = vpack.c.b16 %v286, %v284
        %v291 = vpack.c.b16 %v287, %v285
        %v292 = vpack.c.b16 %v288, %v288
        %v293 = vpack.c.b16 %v289, %v289
        %v320 = vunpack.c.l.b16 %v254
        %v321 = vunpack.c.l.b16 %v255
        %v322 = vunpack.c.l.b16 %v256
        %v323 = vunpack.c.l.b16 %v257
        %v324 = vunpack.c.l.b16 %v258
        %v325 = vunpack.c.l.b16 %v259
        %v326 = vunpack.c.l.b16 %v260
        %v327 = vunpack.c.l.b16 %v261
        %v328 = vunpack.c.l.b16 %v262
        %v329 = vunpack.c.l.b16 %v263
        %v330 = vunpack.c.l.b16 %v264
        %v331 = vunpack.c.l.b16 %v265
        %v332 = vunpack.c.l.b16 %v266
        %v333 = vunpack.c.l.b16 %v267
        %v334 = vunpack.c.l.b16 %v268
        %v335 = vunpack.c.l.b16 %v269
        %v336 = vunpack.c.l.b16 %v270
        %v337 = vunpack.c.l.b16 %v271
        %v338 = vunpack.c.l.b16 %v272
        %v339 = vunpack.c.l.b16 %v273
        %v340 = vunpack.c.l.b16 %v274
        %v341 = vunpack.c.l.b16 %v275
        %v342 = vunpack.c.l.b16 %v276
        %v343 = vunpack.c.l.b16 %v277
        %v344 = vpack.c.b16 %v321, %v320
        %v345 = vpack.c.b16 %v323, %v322
        %v346 = vpack.c.b16 %v325, %v324
        %v347 = vpack.c.b16 %v327, %v326
        %v348 = vpack.c.b16 %v329, %v328
        %v349 = vpack.c.b16 %v331, %v330
        %v350 = vpack.c.b16 %v333, %v332
        %v351 = vpack.c.b16 %v335, %v334
        %v352 = vpack.c.b16 %v337, %v336
        %v353 = vpack.c.b16 %v339, %v338
        %v354 = vpack.c.b16 %v341, %v340
        %v355 = vpack.c.b16 %v343, %v342
        %vm368 = vcmask 523264
        %v370 = vsel %vm368, %v291, 0
        %v373 = vsel %vm368, %v293, 0
        %375 = vmatprep.subr.bf16.mxu0 0
        %376 = vmatpush1.bf16.msra.mxu0 %v351
        %377 = vmatprep.subr.bf16.mxu0 0
        %378 = vmatpush1.bf16.msra.mxu0 %v350
        %379 = vmatprep.subr.bf16.mxu0 0
        %380 = vmatpush1.bf16.msra.mxu0 %v349
        %381 = vmatprep.subr.bf16.mxu0 0
        %382 = vmatpush1.bf16.msra.mxu0 %v348
        %383 = vmatprep.subr.bf16.mxu0 0
        %384 = vmatpush1.bf16.msra.mxu0 %v347
        %385 = vmatprep.subr.bf16.mxu0 0
        %386 = vmatpush1.bf16.msra.mxu0 %v346
        %387 = vmatprep.subr.bf16.mxu0 0
        %388 = vmatpush1.bf16.msra.mxu0 %v345
        %389 = vmatprep.subr.bf16.mxu0 0
        %390 = vmatpush1.bf16.msra.mxu0 %v344
        %391 = vmatprep.subr.bf16.mxu0 0
        %392 = vmatpush2.bf16.msra.mxu0 0
        %393 = vmatprep.subr.bf16.mxu0 0
        %394 = vmatpush2.bf16.msra.mxu0 0
        %395 = vmatprep.subr.bf16.mxu0 0
        %396 = vmatpush2.bf16.msra.mxu0 0
        %397 = vmatprep.subr.bf16.mxu0 0
        %398 = vmatpush2.bf16.msra.mxu0 0
        %399 = vmatprep.subr.bf16.mxu0 0
        %400 = vmatpush2.bf16.msra.mxu0 %v355
        %401 = vmatprep.subr.bf16.mxu0 0
        %402 = vmatpush2.bf16.msra.mxu0 %v354
        %403 = vmatprep.subr.bf16.mxu0 0
        %404 = vmatpush2.bf16.msra.mxu0 %v353
        %405 = vmatprep.subr.bf16.mxu0 0
        %406 = vmatpush2.bf16.msra.mxu0 %v352
        %407 = vmatprep.mubr.bf16.mxu0 %v370
        %408 = vmatmul.mubr.bf16.gmra.mxu0 %v290
        %v409 = vpop.f32.mrf.mxu0
        %v410 = vadd.f32 %v278, %v409
        %v411 = vpop.f32.mrf.mxu0
        %v412 = vpop.f32.mrf.mxu0
        %v413 = vadd.f32 %v279, %v412
        %v414 = vpop.f32.mrf.mxu0
        %415 = vmatprep.mubr.bf16.mxu0 %v373
        %416 = vmatmul.mubr.bf16.gmra.mxu0 %v292
        %v417 = vpop.f32.mrf.mxu0
        %v418 = vadd.f32 %v280, %v417
        %v419 = vpop.f32.mrf.mxu0
        %v420 = vpop.f32.mrf.mxu0
        %v421 = vpop.f32.mrf.mxu0
        %422 = vdwg.mxu0
        %423 = vst [vmem:[%s248] sm:$0xff] %v410
        %424 = vst [vmem:[%s248 + $0x8] sm:$0xff] %v413
        %425 = vst [vmem:[%s248 + $0x10] sm:$0x1] %v418
        %s426 = smul.u32 3, %s19
        %p427 = scmp.lt.s32.totalorder %s20, 1
        %s428 = scalar_select %p427, %s20, 1
        %p429 = scmp.lt.s32.totalorder %s426, 2
        %s430 = scalar_select %p429, %s426, 2
        %s431 = smul.addr %s428, 3
        %s432 = sadd.s32 %s430, %s431
        %s433 = smul.addr %s432, 8
        %s434 = scalar_lea.vmem %s3, %s433
        // Predicated region
        $region37: #{tpu_custom_call.1} parent=31 // pred_check
          %p435 = pneg %p122
        $region38: #{tpu_custom_call.1} parent=31 // pred_check_branch
          %437 = sbr.rel (%p435) target = $region40
        $region39: #{tpu_custom_call.1} parent=31 // pred_region
          %s438 = smul.u32 3, %s19
        $region40: #{tpu_custom_call.1} parent=31 // pred_fallthru
          _
      $region32: #{tpu_custom_call.1} parent=5 // pred_fallthru
        _
      %p439 = scmp.le.s32.totalorder 2, %s10
      // Predicated region
      $region41: #{tpu_custom_call.1} parent=5 // pred_check
        %p440 = pneg %p439
      $region42: #{tpu_custom_call.1} parent=5 // pred_check_branch
        %442 = sbr.rel (%p440) target = $region44
      $region43: #{tpu_custom_call.1} parent=5 // pred_region
        %s443 = ssub.s32 %s10, 2
        // Predicated region
        $region45: #{tpu_custom_call.1} parent=43 // pred_check
          %p444 = pneg %p128
        $region46: #{tpu_custom_call.1} parent=43 // pred_check_branch
          %446 = sbr.rel (%p444) target = $region48
        $region47: #{tpu_custom_call.1} parent=43 // pred_region
          %s447 = smul.u32 3, %s21
          %p448 = scmp.lt.s32.totalorder %s22, 1
          %s449 = scalar_select %p448, %s22, 1
          %p450 = scmp.lt.s32.totalorder %s447, 2
          %s451 = scalar_select %p450, %s447, 2
          %s452 = smul.addr %s449, 3
          %s453 = sadd.s32 %s451, %s452
          %s454 = smul.addr %s453, 8
          %s455 = scalar_lea.vmem %s3, %s454
        $region48: #{tpu_custom_call.1} parent=43 // pred_fallthru
          _
      $region44: #{tpu_custom_call.1} parent=5 // pred_fallthru
        _
    $region6: #{tpu_custom_call.1} parent=1 // loop_footer
      %s14 = sadd.s32 1, %s10
    $region7: #{tpu_custom_call.1} parent=1 // loop_footer_branch
      %9 = sbr.rel target = $region3
    $region8: #{tpu_custom_call.1} parent=1 // loop_exit
      _
    %456 = vsyncpa [#allocation3], 1
    %s457 = scalar_lea.sflag [#allocation3], 1
    %458 = vsyncpa %s457, 1

</llo_original>
